<compile_context>
chip_gen: v7x
topology: tpu7x:2x2x1
jax: 0.10.0
libtpu: 0.0.40
codegen_flags: <defaults>
</compile_context>

<pallas_src>
import math

import jax
import jax.numpy as jnp
from jax.experimental import pallas as pl
from jax.experimental.pallas import tpu as pltpu


def _round_up(x, m):
    return ((x + m - 1) // m) * m


def _wl1_kernel(pred_ref, tgt_ref, w_ref, sum_ref, cnt_ref):
    """Accumulate lane-wide partial |err| sums and (weight==1) counts.

    pred_ref/tgt_ref/w_ref : (rows, tile_f)   native dtype
    sum_ref/cnt_ref        : (1, rows, 128)   f32, resident across the
                             'arbitrary' reduction axis (one block per
                             parallel slice p).
    """
    k = pl.program_id(1)

    @pl.when(k == 0)
    def _init():
        sum_ref[...] = jnp.zeros_like(sum_ref)
        cnt_ref[...] = jnp.zeros_like(cnt_ref)

    rows, tf = pred_ref.shape
    n_chunks = tf // 128

    # Lane-wide partial accumulation: 128-wide, tile-aligned static slices
    # (pure VPU adds; no cross-lane XLU work, no relayout).
    sum_part = jnp.zeros((rows, 128), jnp.float32)
    cnt_part = jnp.zeros((rows, 128), jnp.float32)
    for c in range(n_chunks):
        sl = slice(c * 128, (c + 1) * 128)
        p = pred_ref[:, sl].astype(jnp.float32)
        t = tgt_ref[:, sl].astype(jnp.float32)
        w = w_ref[:, sl].astype(jnp.float32)
        sum_part = sum_part + w * jnp.abs(p - t)
        cnt_part = cnt_part + (w == 1.0).astype(jnp.float32)

    sum_ref[...] += sum_part[None]
    cnt_ref[...] += cnt_part[None]


def weighted_l1_loss(pred, target, weight, *, tile_f=4096,
                     vmem_budget_bytes=12 * 1024 * 1024):
    """pred/target/weight: [N, C, D, H, W] (any float dtype). Returns scalar f32."""
    assert pred.shape == target.shape == weight.shape
    N = pred.shape[0]
    F = 1
    for d in pred.shape[1:]:
        F *= d

    # --- sublane packing: fold r consecutive column-chunks of each batch into
    #     extra rows so rows = lcm(N, 8) fills every (8, 128) vreg ---
    r = 8 // math.gcd(N, 8)
    rows = N * r

    # --- tile sizing: lane-dense multiple of 128, no larger than needed,
    #     capped so 3 inputs x 2 pipeline buffers fit the VMEM budget
    #     (budget chosen to be safe on v5e's 16 MiB scoped default and well
    #     inside v7x's 64 MiB physical VMEM) ---
    F2_min = -(-F // r)  # ceil(F / r): packed column count before padding
    itemsize = max(x.dtype.itemsize for x in (pred, target, weight))
    tile_f = min(tile_f, _round_up(F2_min, 128))
    tile_cap = vmem_budget_bytes // (3 * 2 * rows * itemsize)
    tile_cap = max(128, (tile_cap // 128) * 128)
    tile_f = max(128, min(_round_up(tile_f, 128), tile_cap))

    # --- grid: optional 2-way parallel split of the reduction axis so both
    #     TensorCores on v7x get work; serial (and harmless) on v5e/v6e ---
    n_tiles = -(-F2_min // tile_f)
    if n_tiles >= 2:
        P = 2
        n_tiles = _round_up(n_tiles, 2)
    else:
        P = 1
    K = n_tiles // P
    F2 = n_tiles * tile_f
    F_pad = r * F2

    def prep(x):
        # Native dtype throughout (no wrapper-side f32 materialization).
        x2 = x.reshape(N, F)
        if F_pad > F:
            # Zero padding is exact: weight=0 contributes 0 to the error sum
            # and 0 to the (weight == 1) count.
            x2 = jnp.pad(x2, ((0, 0), (0, F_pad - F)))
        return x2.reshape(rows, F2)

    pred2, tgt2, w2 = prep(pred), prep(target), prep(weight)

    in_spec = pl.BlockSpec((rows, tile_f), lambda p, k: (0, p * K + k))
    out_spec = pl.BlockSpec((1, rows, 128), lambda p, k: (p, 0, 0))

    part_sum, part_cnt = pl.pallas_call(
        _wl1_kernel,
        out_shape=(
            jax.ShapeDtypeStruct((P, rows, 128), jnp.float32),
            jax.ShapeDtypeStruct((P, rows, 128), jnp.float32),
        ),
        grid_spec=pltpu.PrefetchScalarGridSpec(
            num_scalar_prefetch=0,
            grid=(P, K),
            in_specs=[in_spec, in_spec, in_spec],
            out_specs=[out_spec, out_spec],
        ),
        compiler_params=pltpu.CompilerParams(
            dimension_semantics=("parallel", "arbitrary"),
        ),
    )(pred2, tgt2, w2)

    # Tiny epilogue in plain JAX (only P * rows * 128 f32 values):
    # reduce lanes + parallel slices + packed rows, then divide and mean.
    sum_error = part_sum.sum(axis=(0, 2)).reshape(N, r).sum(axis=1)   # [N]
    non_zeros = part_cnt.sum(axis=(0, 2)).reshape(N, r).sum(axis=1)   # [N]
    return jnp.mean(sum_error / non_zeros)


def _reference(pred, target, weight):
    error = weight * jnp.abs(pred - target)
    sum_error = jnp.sum(error, axis=(1, 2, 3, 4))
    non_zeros = jnp.sum((weight == 1).astype(jnp.float32), axis=(1, 2, 3, 4))
    return jnp.mean(sum_error / non_zeros)


if __name__ == "__main__":
    key = jax.random.PRNGKey(0)

    # Case 1: small, nicely-divisible 5-D shape [N, C, D, H, W].
    k1, k2, k3, key = jax.random.split(key, 4)
    N, C, D, H, W = 2, 4, 8, 8, 8
    pred = jax.random.normal(k1, (N, C, D, H, W), dtype=jnp.float32)
    target = jax.random.normal(k2, (N, C, D, H, W), dtype=jnp.float32)
    weight = jax.random.bernoulli(k3, 0.5, (N, C, D, H, W)).astype(jnp.float32)

    loss = jax.block_until_ready(weighted_l1_loss(pred, target, weight))
    ref = jax.block_until_ready(_reference(pred, target, weight))
    assert jnp.allclose(loss, ref, rtol=1e-5, atol=1e-5), (loss, ref)

    # Case 2: odd batch / odd feature count -> exercises sublane packing + padding.
    k1, k2, k3, key = jax.random.split(key, 4)
    N, C, D, H, W = 3, 3, 5, 7, 9
    pred = jax.random.normal(k1, (N, C, D, H, W), dtype=jnp.float32)
    target = jax.random.normal(k2, (N, C, D, H, W), dtype=jnp.float32)
    weight = jax.random.bernoulli(k3, 0.5, (N, C, D, H, W)).astype(jnp.float32)

    loss = jax.block_until_ready(weighted_l1_loss(pred, target, weight))
    ref = jax.block_until_ready(_reference(pred, target, weight))
    assert jnp.allclose(loss, ref, rtol=1e-5, atol=1e-5), (loss, ref)

    print("KERNEL_OK")
</pallas_src>

<mosaic_0001>
module attributes {stable_mosaic.version = 11 : i64} {
  func.func @_wl1_kernel(%arg0: i32, %arg1: i32, %arg2: memref<8x512xf32, #tpu.memory_space<vmem>>, %arg3: memref<8x512xf32, #tpu.memory_space<vmem>>, %arg4: memref<8x512xf32, #tpu.memory_space<vmem>>, %arg5: memref<1x8x128xf32, #tpu.memory_space<vmem>>, %arg6: memref<1x8x128xf32, #tpu.memory_space<vmem>>) attributes {dimension_semantics = [#tpu.dimension_semantics<parallel>, #tpu.dimension_semantics<arbitrary>], iteration_bounds = array<i64: 1, 1>, scalar_prefetch = 0 : i64, scratch_operands = 0 : i64, tpu.core_type = #tpu.core_type<tc>, window_params = [{transform_indices = @transform_0, window_bounds = array<i64: 8, 512>}, {transform_indices = @transform_1, window_bounds = array<i64: 8, 512>}, {transform_indices = @transform_2, window_bounds = array<i64: 8, 512>}, {transform_indices = @transform_3, window_bounds = array<i64: 1, 8, 128>}, {transform_indices = @transform_4, window_bounds = array<i64: 1, 8, 128>}]} {
    %c0_i32 = arith.constant 0 : i32
    %0 = arith.cmpi eq, %arg1, %c0_i32 : i32
    %1 = arith.extui %0 : i1 to i32
    %c0_i32_0 = arith.constant 0 : i32
    %2 = arith.cmpi ne, %1, %c0_i32_0 : i32
    scf.if %2 {
      %cst_38 = arith.constant 0.000000e+00 : f32
      %61 = vector.broadcast %cst_38 : f32 to vector<1x8x128xf32>
      %c0_39 = arith.constant 0 : index
      %c0_40 = arith.constant 0 : index
      %c0_41 = arith.constant 0 : index
      %62 = vector.load %arg5[%c0_39, %c0_40, %c0_41] : memref<1x8x128xf32, #tpu.memory_space<vmem>>, vector<1x8x128xf32>
      tpu.vector_store %arg5[%c0_39, %c0_40, %c0_41], %61 {strides = array<i32>} : memref<1x8x128xf32, #tpu.memory_space<vmem>>, vector<1x8x128xf32>,
      %cst_42 = arith.constant 0.000000e+00 : f32
      %63 = vector.broadcast %cst_42 : f32 to vector<1x8x128xf32>
      %c0_43 = arith.constant 0 : index
      %c0_44 = arith.constant 0 : index
      %c0_45 = arith.constant 0 : index
      %64 = vector.load %arg6[%c0_43, %c0_44, %c0_45] : memref<1x8x128xf32, #tpu.memory_space<vmem>>, vector<1x8x128xf32>
      tpu.vector_store %arg6[%c0_43, %c0_44, %c0_45], %63 {strides = array<i32>} : memref<1x8x128xf32, #tpu.memory_space<vmem>>, vector<1x8x128xf32>,
    } else {
    }
    %cst = arith.constant 0.000000e+00 : f32
    %3 = vector.broadcast %cst : f32 to vector<8x128xf32>
    %cst_1 = arith.constant 0.000000e+00 : f32
    %4 = vector.broadcast %cst_1 : f32 to vector<8x128xf32>
    %c0 = arith.constant 0 : index
    %c0_2 = arith.constant 0 : index
    %5 = vector.load %arg2[%c0, %c0_2] : memref<8x512xf32, #tpu.memory_space<vmem>>, vector<8x128xf32>
    %c0_3 = arith.constant 0 : index
    %c0_4 = arith.constant 0 : index
    %6 = vector.load %arg3[%c0_3, %c0_4] : memref<8x512xf32, #tpu.memory_space<vmem>>, vector<8x128xf32>
    %c0_5 = arith.constant 0 : index
    %c0_6 = arith.constant 0 : index
    %7 = vector.load %arg4[%c0_5, %c0_6] : memref<8x512xf32, #tpu.memory_space<vmem>>, vector<8x128xf32>
    %8 = arith.subf %5, %6 : vector<8x128xf32>
    %9 = math.absf %8 : vector<8x128xf32>
    %10 = arith.mulf %7, %9 : vector<8x128xf32>
    %11 = arith.addf %3, %10 : vector<8x128xf32>
    %cst_7 = arith.constant 1.000000e+00 : f32
    %12 = vector.broadcast %cst_7 : f32 to vector<8x128xf32>
    %13 = arith.cmpf oeq, %7, %12 : vector<8x128xf32>
    %14 = arith.extui %13 : vector<8x128xi1> to vector<8x128xi32>
    %15 = arith.sitofp %14 : vector<8x128xi32> to vector<8x128xf32>
    %16 = arith.addf %4, %15 : vector<8x128xf32>
    %c0_8 = arith.constant 0 : index
    %c128 = arith.constant 128 : index
    %17 = vector.load %arg2[%c0_8, %c128] : memref<8x512xf32, #tpu.memory_space<vmem>>, vector<8x128xf32>
    %c0_9 = arith.constant 0 : index
    %c128_10 = arith.constant 128 : index
    %18 = vector.load %arg3[%c0_9, %c128_10] : memref<8x512xf32, #tpu.memory_space<vmem>>, vector<8x128xf32>
    %c0_11 = arith.constant 0 : index
    %c128_12 = arith.constant 128 : index
    %19 = vector.load %arg4[%c0_11, %c128_12] : memref<8x512xf32, #tpu.memory_space<vmem>>, vector<8x128xf32>
    %20 = arith.subf %17, %18 : vector<8x128xf32>
    %21 = math.absf %20 : vector<8x128xf32>
    %22 = arith.mulf %19, %21 : vector<8x128xf32>
    %23 = arith.addf %11, %22 : vector<8x128xf32>
    %cst_13 = arith.constant 1.000000e+00 : f32
    %24 = vector.broadcast %cst_13 : f32 to vector<8x128xf32>
    %25 = arith.cmpf oeq, %19, %24 : vector<8x128xf32>
    %26 = arith.extui %25 : vector<8x128xi1> to vector<8x128xi32>
    %27 = arith.sitofp %26 : vector<8x128xi32> to vector<8x128xf32>
    %28 = arith.addf %16, %27 : vector<8x128xf32>
    %c0_14 = arith.constant 0 : index
    %c256 = arith.constant 256 : index
    %29 = vector.load %arg2[%c0_14, %c256] : memref<8x512xf32, #tpu.memory_space<vmem>>, vector<8x128xf32>
    %c0_15 = arith.constant 0 : index
    %c256_16 = arith.constant 256 : index
    %30 = vector.load %arg3[%c0_15, %c256_16] : memref<8x512xf32, #tpu.memory_space<vmem>>, vector<8x128xf32>
    %c0_17 = arith.constant 0 : index
    %c256_18 = arith.constant 256 : index
    %31 = vector.load %arg4[%c0_17, %c256_18] : memref<8x512xf32, #tpu.memory_space<vmem>>, vector<8x128xf32>
    %32 = arith.subf %29, %30 : vector<8x128xf32>
    %33 = math.absf %32 : vector<8x128xf32>
    %34 = arith.mulf %31, %33 : vector<8x128xf32>
    %35 = arith.addf %23, %34 : vector<8x128xf32>
    %cst_19 = arith.constant 1.000000e+00 : f32
    %36 = vector.broadcast %cst_19 : f32 to vector<8x128xf32>
    %37 = arith.cmpf oeq, %31, %36 : vector<8x128xf32>
    %38 = arith.extui %37 : vector<8x128xi1> to vector<8x128xi32>
    %39 = arith.sitofp %38 : vector<8x128xi32> to vector<8x128xf32>
    %40 = arith.addf %28, %39 : vector<8x128xf32>
    %c0_20 = arith.constant 0 : index
    %c384 = arith.constant 384 : index
    %41 = vector.load %arg2[%c0_20, %c384] : memref<8x512xf32, #tpu.memory_space<vmem>>, vector<8x128xf32>
    %c0_21 = arith.constant 0 : index
    %c384_22 = arith.constant 384 : index
    %42 = vector.load %arg3[%c0_21, %c384_22] : memref<8x512xf32, #tpu.memory_space<vmem>>, vector<8x128xf32>
    %c0_23 = arith.constant 0 : index
    %c384_24 = arith.constant 384 : index
    %43 = vector.load %arg4[%c0_23, %c384_24] : memref<8x512xf32, #tpu.memory_space<vmem>>, vector<8x128xf32>
    %44 = arith.subf %41, %42 : vector<8x128xf32>
    %45 = math.absf %44 : vector<8x128xf32>
    %46 = arith.mulf %43, %45 : vector<8x128xf32>
    %47 = arith.addf %35, %46 : vector<8x128xf32>
    %cst_25 = arith.constant 1.000000e+00 : f32
    %48 = vector.broadcast %cst_25 : f32 to vector<8x128xf32>
    %49 = arith.cmpf oeq, %43, %48 : vector<8x128xf32>
    %50 = arith.extui %49 : vector<8x128xi1> to vector<8x128xi32>
    %51 = arith.sitofp %50 : vector<8x128xi32> to vector<8x128xf32>
    %52 = arith.addf %40, %51 : vector<8x128xf32>
    %c0_26 = arith.constant 0 : index
    %c0_27 = arith.constant 0 : index
    %c0_28 = arith.constant 0 : index
    %53 = vector.load %arg5[%c0_26, %c0_27, %c0_28] : memref<1x8x128xf32, #tpu.memory_space<vmem>>, vector<1x8x128xf32>
    %54 = vector.shape_cast %47 : vector<8x128xf32> to vector<1x8x128xf32>
    %55 = arith.addf %53, %54 : vector<1x8x128xf32>
    %c0_29 = arith.constant 0 : index
    %c0_30 = arith.constant 0 : index
    %c0_31 = arith.constant 0 : index
    %56 = vector.load %arg5[%c0_29, %c0_30, %c0_31] : memref<1x8x128xf32, #tpu.memory_space<vmem>>, vector<1x8x128xf32>
    tpu.vector_store %arg5[%c0_29, %c0_30, %c0_31], %55 {strides = array<i32>} : memref<1x8x128xf32, #tpu.memory_space<vmem>>, vector<1x8x128xf32>,
    %c0_32 = arith.constant 0 : index
    %c0_33 = arith.constant 0 : index
    %c0_34 = arith.constant 0 : index
    %57 = vector.load %arg6[%c0_32, %c0_33, %c0_34] : memref<1x8x128xf32, #tpu.memory_space<vmem>>, vector<1x8x128xf32>
    %58 = vector.shape_cast %52 : vector<8x128xf32> to vector<1x8x128xf32>
    %59 = arith.addf %57, %58 : vector<1x8x128xf32>
    %c0_35 = arith.constant 0 : index
    %c0_36 = arith.constant 0 : index
    %c0_37 = arith.constant 0 : index
    %60 = vector.load %arg6[%c0_35, %c0_36, %c0_37] : memref<1x8x128xf32, #tpu.memory_space<vmem>>, vector<1x8x128xf32>
    tpu.vector_store %arg6[%c0_35, %c0_36, %c0_37], %59 {strides = array<i32>} : memref<1x8x128xf32, #tpu.memory_space<vmem>>, vector<1x8x128xf32>,
    return
  }
  func.func @transform_0(%arg0: i32, %arg1: i32) -> (i32, i32) {
    %c1_i32 = arith.constant 1 : i32
    %0 = arith.muli %arg0, %c1_i32 : i32
    %1 = arith.addi %0, %arg1 : i32
    %c0_i32 = arith.constant 0 : i32
    %c0_i32_0 = arith.constant 0 : i32
    return %c0_i32, %1 : i32, i32
  }
  func.func @transform_1(%arg0: i32, %arg1: i32) -> (i32, i32) {
    %c1_i32 = arith.constant 1 : i32
    %0 = arith.muli %arg0, %c1_i32 : i32
    %1 = arith.addi %0, %arg1 : i32
    %c0_i32 = arith.constant 0 : i32
    %c0_i32_0 = arith.constant 0 : i32
    return %c0_i32, %1 : i32, i32
  }
  func.func @transform_2(%arg0: i32, %arg1: i32) -> (i32, i32) {
    %c1_i32 = arith.constant 1 : i32
    %0 = arith.muli %arg0, %c1_i32 : i32
    %1 = arith.addi %0, %arg1 : i32
    %c0_i32 = arith.constant 0 : i32
    %c0_i32_0 = arith.constant 0 : i32
    return %c0_i32, %1 : i32, i32
  }
  func.func @transform_3(%arg0: i32, %arg1: i32) -> (i32, i32, i32) {
    %c0_i32 = arith.constant 0 : i32
    %c0_i32_0 = arith.constant 0 : i32
    %c0_i32_1 = arith.constant 0 : i32
    return %arg0, %c0_i32, %c0_i32_0 : i32, i32, i32
  }
  func.func @transform_4(%arg0: i32, %arg1: i32) -> (i32, i32, i32) {
    %c0_i32 = arith.constant 0 : i32
    %c0_i32_0 = arith.constant 0 : i32
    %c0_i32_1 = arith.constant 0 : i32
    return %arg0, %c0_i32, %c0_i32_0 : i32, i32, i32
  }
}

</mosaic_0001>

<llo_original>
// kernel: tpu_custom_call.1
$region0: #{tpu_custom_call.1}
  #allocation0 [shape = 'u32[]', space=smem, size = 0x4, offset = 0x4, fixed_abs, tag = 'smem constant byte address 0x4 - core index']
  #allocation1 [shape = 'u32[144,128]{1,0:T(1,128)}', space=vmem, size = 0x12000, scoped, tag = 'internal scratch']
  %s0 = inlined_call_operand.hbm [shape: f32[8,512], index: 0, kind: input, shape index: {}]
  %s1 = inlined_call_operand.hbm [shape: f32[8,512], index: 1, kind: input, shape index: {}]
  %s2 = inlined_call_operand.hbm [shape: f32[8,512], index: 2, kind: input, shape index: {}]
  %s3 = inlined_call_operand.hbm [shape: f32[1,8,128], index: 3, kind: output, shape index: {0}]
  %s4 = inlined_call_operand.hbm [shape: f32[1,8,128], index: 4, kind: output, shape index: {1}]
  %5 = xla_tuple %s3, %s4
  %s6 = sld [smem:[#allocation0]]
  $region46: #{tpu_custom_call.1} parent=0
    _
  %s8 = ssub.s32 1, %s6
  %s9 = scalar_select 0, %s8, %s6
  $region1: #{tpu_custom_call.1} parent=0
    #allocation2 [shape = 'u8[16384]{0}', space=vmem, size = 0x4000, scoped, tag = 'input window, operand 0, single buffered']
    #allocation3 [shape = 's32[1]{0}', space=sflag, size = 0x4, scoped, tag = 'scoped memory for tpu_custom_call.1']
    #allocation4 [shape = 's32[1]{0}', space=sflag, size = 0x4, scoped, tag = 'scoped memory for tpu_custom_call.1']
    #allocation5 [shape = 'u8[16384]{0}', space=vmem, size = 0x4000, scoped, tag = 'input window, operand 1, single buffered']
    #allocation6 [shape = 's32[1]{0}', space=sflag, size = 0x4, scoped, tag = 'scoped memory for tpu_custom_call.1']
    #allocation7 [shape = 'u8[16384]{0}', space=vmem, size = 0x4000, scoped, tag = 'input window, operand 2, single buffered']
    #allocation8 [shape = 'u8[4096]{0}', space=vmem, size = 0x1000, scoped, tag = 'output window, operand 0, single buffered']
    #allocation9 [shape = 'u8[4096]{0}', space=vmem, size = 0x1000, scoped, tag = 'output window, operand 1, single buffered']
    #allocation10 [shape = 's32[1]{0}', space=sflag, size = 0x4, scoped, tag = 'scoped memory for tpu_custom_call.1']
    %10 = vsyncpa [#allocation3], 0
    %11 = vsyncpa [#allocation6], 0
    %12 = vsyncpa [#allocation4], 0
    %13 = vsyncpa [#allocation10], 0
    // Predicated region
    $region2: #{tpu_custom_call.1} parent=1 // pred_check
      _
    $region3: #{tpu_custom_call.1} parent=1 // pred_check_branch
      %15 = sbr.rel (0) target = $region5
    $region4: #{tpu_custom_call.1} parent=1 // pred_region
      %s16 = sadd.s32 0, 0
      %s17 = smul.u32 4, %s16
      %s19 = ssub.s32 512, 512
      %20 = vsyncadd [#allocation3], %s19
      %s21 = smul.addr %s17, 128
      %s22 = scalar_lea.hbm %s0, %s21
      %s24 = sshll.u32 [#allocation2], 4
      %s25 = int_to_ptr.vmem [resolvable:$true] %s24
      %27 = dma.hbm_to_vmem [thread:$0]  %s22, 512, %s25, [#allocation3]
    $region5: #{tpu_custom_call.1} parent=1 // pred_fallthru
      _
    // Predicated region
    $region6: #{tpu_custom_call.1} parent=1 // pred_check
      _
    $region7: #{tpu_custom_call.1} parent=1 // pred_check_branch
      %29 = sbr.rel (0) target = $region9
    $region8: #{tpu_custom_call.1} parent=1 // pred_region
      %s30 = sadd.s32 0, 0
      %s31 = smul.u32 4, %s30
      %s33 = ssub.s32 512, 512
      %34 = vsyncadd [#allocation6], %s33
      %s35 = smul.addr %s31, 128
      %s36 = scalar_lea.hbm %s1, %s35
      %s38 = sshll.u32 [#allocation5], 4
      %s39 = int_to_ptr.vmem [resolvable:$true] %s38
      %41 = dma.hbm_to_vmem [thread:$0]  %s36, 512, %s39, [#allocation6]
    $region9: #{tpu_custom_call.1} parent=1 // pred_fallthru
      _
    // Predicated region
    $region10: #{tpu_custom_call.1} parent=1 // pred_check
      _
    $region11: #{tpu_custom_call.1} parent=1 // pred_check_branch
      %43 = sbr.rel (0) target = $region13
    $region12: #{tpu_custom_call.1} parent=1 // pred_region
      %s44 = sadd.s32 0, 0
      %s45 = smul.u32 4, %s44
      %s47 = ssub.s32 512, 512
      %48 = vsyncadd [#allocation6], %s47
      %s49 = smul.addr %s45, 128
      %s50 = scalar_lea.hbm %s2, %s49
      %s52 = sshll.u32 [#allocation7], 4
      %s53 = int_to_ptr.vmem [resolvable:$true] %s52
      %55 = dma.hbm_to_vmem [thread:$0]  %s50, 512, %s53, [#allocation6]
    $region13: #{tpu_custom_call.1} parent=1 // pred_fallthru
      _
    // Predicated region
    $region14: #{tpu_custom_call.1} parent=1 // pred_check
      _
    $region15: #{tpu_custom_call.1} parent=1 // pred_check_branch
      %57 = sbr.rel (0) target = $region17
    $region16: #{tpu_custom_call.1} parent=1 // pred_region
      %58 = dma.done [#allocation3], 512
    $region17: #{tpu_custom_call.1} parent=1 // pred_fallthru
      _
    // Predicated region
    $region18: #{tpu_custom_call.1} parent=1 // pred_check
      _
    $region19: #{tpu_custom_call.1} parent=1 // pred_check_branch
      %60 = sbr.rel (0) target = $region21
    $region20: #{tpu_custom_call.1} parent=1 // pred_region
      %61 = dma.done [#allocation6], 512
    $region21: #{tpu_custom_call.1} parent=1 // pred_fallthru
      _
    // Predicated region
    $region22: #{tpu_custom_call.1} parent=1 // pred_check
      _
    $region23: #{tpu_custom_call.1} parent=1 // pred_check_branch
      %63 = sbr.rel (0) target = $region25
    $region24: #{tpu_custom_call.1} parent=1 // pred_region
      %64 = dma.done [#allocation6], 512
    $region25: #{tpu_custom_call.1} parent=1 // pred_fallthru
      _
    %s65 = sadd.s32 0, 0
    %s66 = smul.u32 4, %s65
    %s67 = sadd.s32 0, 0
    %s68 = smul.u32 4, %s67
    %s69 = sadd.s32 0, 0
    %s70 = smul.u32 4, %s69
    %p71 = scmp.eq.s32.totalorder 0, 0
    // Predicated region
    $region26: #{tpu_custom_call.1} parent=1 // pred_check
      %p72 = pneg %p71
    $region27: #{tpu_custom_call.1} parent=1 // pred_check_branch
      %74 = sbr.rel (%p72) target = $region29
    $region28: #{tpu_custom_call.1} parent=1 // pred_region
      %75 = vst [vmem:[#allocation8] sm:$0xff] 0.0
      %76 = vst [vmem:[#allocation9] sm:$0xff] 0.0
    $region29: #{tpu_custom_call.1} parent=1 // pred_fallthru
      _
    %v77 = vld [vmem:[#allocation2] sm:$0xff]
    %v78 = vld [vmem:[#allocation5] sm:$0xff]
    %v79 = vld [vmem:[#allocation7] sm:$0xff]
    %v80 = vsub.f32 %v77, %v78
    %v81 = vand.u32 2147483647, %v80
    %v82 = vmul.f32 %v79, %v81
    %v83 = vadd.f32 %v82, 0.0
    %vm84 = vcmp.eq.f32.partialorder %v79, 1.0
    %v85 = vsel %vm84, 1, 0
    %v86 = vcvt.s32.f32 %v85
    %v87 = vadd.f32 %v86, 0.0
    %v88 = vld [vmem:[#allocation2 + $0x8] sm:$0xff]
    %v89 = vld [vmem:[#allocation5 + $0x8] sm:$0xff]
    %v90 = vld [vmem:[#allocation7 + $0x8] sm:$0xff]
    %v91 = vsub.f32 %v88, %v89
    %v92 = vand.u32 2147483647, %v91
    %v93 = vmul.f32 %v90, %v92
    %v94 = vadd.f32 %v83, %v93
    %vm95 = vcmp.eq.f32.partialorder %v90, 1.0
    %v96 = vsel %vm95, 1, 0
    %v97 = vcvt.s32.f32 %v96
    %v98 = vadd.f32 %v87, %v97
    %v99 = vld [vmem:[#allocation2 + $0x10] sm:$0xff]
    %v100 = vld [vmem:[#allocation5 + $0x10] sm:$0xff]
    %v101 = vld [vmem:[#allocation7 + $0x10] sm:$0xff]
    %v102 = vsub.f32 %v99, %v100
    %v103 = vand.u32 2147483647, %v102
    %v104 = vmul.f32 %v101, %v103
    %v105 = vadd.f32 %v94, %v104
    %vm106 = vcmp.eq.f32.partialorder %v101, 1.0
    %v107 = vsel %vm106, 1, 0
    %v108 = vcvt.s32.f32 %v107
    %v109 = vadd.f32 %v98, %v108
    %v110 = vld [vmem:[#allocation2 + $0x18] sm:$0xff]
    %v111 = vld [vmem:[#allocation5 + $0x18] sm:$0xff]
    %v112 = vld [vmem:[#allocation7 + $0x18] sm:$0xff]
    %v113 = vsub.f32 %v110, %v111
    %v114 = vand.u32 2147483647, %v113
    %v115 = vmul.f32 %v112, %v114
    %v116 = vadd.f32 %v105, %v115
    %vm117 = vcmp.eq.f32.partialorder %v112, 1.0
    %v118 = vsel %vm117, 1, 0
    %v119 = vcvt.s32.f32 %v118
    %v120 = vadd.f32 %v109, %v119
    %v121 = vld [vmem:[#allocation8] sm:$0xff]
    %v122 = vadd.f32 %v121, %v116
    %123 = vst [vmem:[#allocation8] sm:$0xff] %v122
    %v124 = vld [vmem:[#allocation9] sm:$0xff]
    %v125 = vadd.f32 %v124, %v120
    %126 = vst [vmem:[#allocation9] sm:$0xff] %v125
    // Predicated region
    $region30: #{tpu_custom_call.1} parent=1 // pred_check
      _
    $region31: #{tpu_custom_call.1} parent=1 // pred_check_branch
      %128 = sbr.rel (0) target = $region33
    $region32: #{tpu_custom_call.1} parent=1 // pred_region
      %s130 = ssub.s32 128, 128
      %131 = vsyncadd [#allocation4], %s130
      %s133 = sshll.u32 [#allocation8], 4
      %s134 = int_to_ptr.vmem [resolvable:$true] %s133
      %136 = dma.vmem_to_hbm [thread:$0]  %s134, 128, %s3, [#allocation4]
    $region33: #{tpu_custom_call.1} parent=1 // pred_fallthru
      _
    // Predicated region
    $region34: #{tpu_custom_call.1} parent=1 // pred_check
      _
    $region35: #{tpu_custom_call.1} parent=1 // pred_check_branch
      %138 = sbr.rel (0) target = $region37
    $region36: #{tpu_custom_call.1} parent=1 // pred_region
      %s140 = ssub.s32 128, 128
      %141 = vsyncadd [#allocation10], %s140
      %s143 = sshll.u32 [#allocation9], 4
      %s144 = int_to_ptr.vmem [resolvable:$true] %s143
      %146 = dma.vmem_to_hbm [thread:$0]  %s144, 128, %s4, [#allocation10]
    $region37: #{tpu_custom_call.1} parent=1 // pred_fallthru
      _
    // Predicated region
    $region38: #{tpu_custom_call.1} parent=1 // pred_check
      _
    $region39: #{tpu_custom_call.1} parent=1 // pred_check_branch
      %148 = sbr.rel (0) target = $region41
    $region40: #{tpu_custom_call.1} parent=1 // pred_region
      %149 = dma.done [#allocation4], 128
    $region41: #{tpu_custom_call.1} parent=1 // pred_fallthru
      _
    // Predicated region
    $region42: #{tpu_custom_call.1} parent=1 // pred_check
      _
    $region43: #{tpu_custom_call.1} parent=1 // pred_check_branch
      %151 = sbr.rel (0) target = $region45
    $region44: #{tpu_custom_call.1} parent=1 // pred_region
      %152 = dma.done [#allocation10], 128
    $region45: #{tpu_custom_call.1} parent=1 // pred_fallthru
      _
    %153 = vsyncpa [#allocation3], 1
    %154 = vsyncpa [#allocation6], 1
    %155 = vsyncpa [#allocation4], 1
    %156 = vsyncpa [#allocation10], 1

</llo_original>
